<compile_context>
chip_gen: v6e
topology: v6e:2x2x1
jax: 0.10.0
libtpu: 0.0.40
codegen_flags: <defaults>
</compile_context>

<pallas_src>
import functools

import jax
import jax.numpy as jnp
from jax.experimental import pallas as pl
from jax.experimental.pallas import tpu as pltpu

_LANE = 128


def _round_up(x, m):
    return (x + m - 1) // m * m


def _aspp_pool_kernel(x_ref, w_ref, scale_ref, shift_ref, o_ref, acc_ref, *, inv_hw):
    # x_ref:     (1, C_in, T_HW)  current spatial tile of one batch element
    # w_ref:     (C_in, C_out)    1x1 conv weight (transposed)
    # scale_ref: (1, C_out)       gamma / sqrt(running_var + eps)
    # shift_ref: (1, C_out)       beta - running_mean * scale
    # o_ref:     (1, 1, C_out)    pooled -> conv -> BN -> ReLU activation
    # acc_ref:   (1, C_in) f32    running spatial sum (VMEM scratch, persists over t)
    t = pl.program_id(1)

    @pl.when(t == 0)
    def _():
        acc_ref[...] = jnp.zeros_like(acc_ref)

    # Hot loop: one lane-reduce + one VPU add per tile. The 1/HW scale is applied
    # once in finalize; zero-padded lanes contribute nothing to the sum.
    acc_ref[...] += jnp.sum(x_ref[...].astype(jnp.float32), axis=-1)

    @pl.when(t == pl.num_programs(1) - 1)
    def _():
        pooled = acc_ref[...] * inv_hw                                   # (1, C_in)
        # 1x1 conv == tiny matmul; runs once per batch element, off the DMA-bound
        # hot loop, so its MXU push/pop latency is irrelevant.
        y = jnp.dot(pooled, w_ref[...].astype(jnp.float32),
                    preferred_element_type=jnp.float32)                  # (1, C_out)
        y = y * scale_ref[...] + shift_ref[...]                          # eval-mode BN
        y = jnp.maximum(y, 0.0)                                          # ReLU
        o_ref[...] = y[None].astype(o_ref.dtype)                         # (1, 1, C_out)


def aspp_pooling(x, conv_w, gamma, beta, running_mean, running_var, eps=1e-5):
    """_AsppPooling forward.  x: (N, C_in, H, W).  conv_w: (C_out, C_in, 1, 1)."""
    N, C_in, H, W = x.shape
    C_out = conv_w.shape[0]
    HW = H * W

    # ---- lane-dense HW tiling sized for ~4 MiB VMEM blocks (fits v7x 64 MiB) ----
    bytes_per_lane = C_in * x.dtype.itemsize
    target_tile_bytes = 4 * 1024 * 1024
    t_hw = max(_LANE, (target_tile_bytes // max(bytes_per_lane, 1)) // _LANE * _LANE)
    t_hw = min(t_hw, _round_up(HW, _LANE))
    hw_pad = _round_up(HW, t_hw)
    num_t = hw_pad // t_hw

    x_flat = x.reshape(N, C_in, HW)
    if hw_pad != HW:
        # Zero padding is excluded from the mean: we divide by the true HW.
        x_flat = jnp.pad(x_flat, ((0, 0), (0, 0), (0, hw_pad - HW)))

    w_t = conv_w.reshape(C_out, C_in).T.astype(jnp.float32)              # (C_in, C_out)
    scale = (gamma / jnp.sqrt(running_var + eps)).astype(jnp.float32)
    shift = beta.astype(jnp.float32) - running_mean.astype(jnp.float32) * scale
    scale = scale.reshape(1, C_out)
    shift = shift.reshape(1, C_out)
    # TODO(synk): PyTorch BatchNorm in training mode would use batch statistics;
    # this implements eval-mode BN with folded running stats.

    kernel = functools.partial(_aspp_pool_kernel, inv_hw=1.0 / HW)

    cost = pl.CostEstimate(
        flops=int(N * C_in * hw_pad + 2 * N * C_in * C_out + 3 * N * C_out),
        transcendentals=0,
        bytes_accessed=int(x_flat.size * x_flat.dtype.itemsize
                           + w_t.size * 4 + 2 * C_out * 4
                           + N * C_out * x.dtype.itemsize),
    )

    pooled_act = pl.pallas_call(
        kernel,
        out_shape=jax.ShapeDtypeStruct((N, 1, C_out), x.dtype),
        grid_spec=pltpu.PrefetchScalarGridSpec(
            num_scalar_prefetch=0,
            grid=(N, num_t),
            in_specs=[
                pl.BlockSpec((1, C_in, t_hw), lambda n, t: (n, 0, t)),   # x tile
                pl.BlockSpec((C_in, C_out), lambda n, t: (0, 0)),        # conv weight
                pl.BlockSpec((1, C_out), lambda n, t: (0, 0)),           # BN scale
                pl.BlockSpec((1, C_out), lambda n, t: (0, 0)),           # BN shift
            ],
            out_specs=pl.BlockSpec((1, 1, C_out), lambda n, t: (n, 0, 0)),
            scratch_shapes=[pltpu.VMEM((1, C_in), jnp.float32)],
        ),
        compiler_params=pltpu.CompilerParams(
            dimension_semantics=("parallel", "arbitrary"),
            vmem_limit_bytes=32 * 1024 * 1024,
        ),
        cost_estimate=cost,
    )(x_flat, w_t, scale, shift)

    # Bilinear upsample of a 1x1 map with align_corners=True == broadcast.  Left to
    # XLA (fusible into the consumer) instead of burning N*C_out*H*W HBM writeback
    # inside the kernel (per performance review).
    y = pooled_act.reshape(N, C_out)
    return jnp.broadcast_to(y[:, :, None, None], (N, C_out, H, W))


def _reference(x, conv_w, gamma, beta, running_mean, running_var, eps=1e-5):
    pooled = jnp.mean(x, axis=(2, 3))                                    # (N, C_in)
    y = pooled @ conv_w.reshape(conv_w.shape[0], -1).T                   # (N, C_out)
    y = (y - running_mean) / jnp.sqrt(running_var + eps) * gamma + beta
    y = jnp.maximum(y, 0.0)
    return jnp.broadcast_to(y[:, :, None, None],
                            (x.shape[0], conv_w.shape[0], x.shape[2], x.shape[3]))


if __name__ == "__main__":
    key = jax.random.PRNGKey(0)
    k_x, k_w, k_g, k_b = jax.random.split(key, 4)

    N, C_in, C_out, H, W = 2, 4, 8, 16, 16
    x = jax.random.normal(k_x, (N, C_in, H, W), dtype=jnp.float32)

    conv_w = jax.random.normal(k_w, (C_out, C_in, 1, 1), dtype=jnp.float32) * 0.1
    gamma = 1.0 + 0.1 * jax.random.normal(k_g, (C_out,), dtype=jnp.float32)
    beta = 0.1 * jax.random.normal(k_b, (C_out,), dtype=jnp.float32)
    running_mean = jnp.zeros((C_out,), dtype=jnp.float32)
    running_var = jnp.ones((C_out,), dtype=jnp.float32)

    out = aspp_pooling(x, conv_w, gamma, beta, running_mean, running_var)
    out = jax.block_until_ready(out)

    ref = _reference(x, conv_w, gamma, beta, running_mean, running_var)
    assert out.shape == (N, C_out, H, W)
    assert jnp.allclose(out, ref, atol=1e-5, rtol=1e-5), "mismatch vs reference"

    print("KERNEL_OK")
</pallas_src>

<mosaic_0001>
module attributes {stable_mosaic.version = 11 : i64} {
  func.func @_aspp_pool_kernel(%arg0: i32, %arg1: i32, %arg2: memref<1x4x256xf32, #tpu.memory_space<vmem>>, %arg3: memref<4x8xf32, #tpu.memory_space<vmem>>, %arg4: memref<1x8xf32, #tpu.memory_space<vmem>>, %arg5: memref<1x8xf32, #tpu.memory_space<vmem>>, %arg6: memref<1x1x8xf32, #tpu.memory_space<vmem>>, %arg7: memref<1x4xf32, #tpu.memory_space<vmem>>) attributes {dimension_semantics = [#tpu.dimension_semantics<parallel>, #tpu.dimension_semantics<arbitrary>], iteration_bounds = array<i64: 2, 1>, scalar_prefetch = 0 : i64, scratch_operands = 1 : i64, tpu.core_type = #tpu.core_type<tc>, window_params = [{transform_indices = @transform_0, window_bounds = array<i64: 1, 4, 256>}, {pipeline_mode = #tpu.pipeline_mode<synchronous>, transform_indices = @transform_1, window_bounds = array<i64: 4, 8>}, {pipeline_mode = #tpu.pipeline_mode<synchronous>, transform_indices = @transform_2, window_bounds = array<i64: 1, 8>}, {pipeline_mode = #tpu.pipeline_mode<synchronous>, transform_indices = @transform_3, window_bounds = array<i64: 1, 8>}, {transform_indices = @transform_4, window_bounds = array<i64: 1, 1, 8>}]} {
    %c0_i32 = arith.constant 0 : i32
    %0 = arith.cmpi eq, %arg1, %c0_i32 : i32
    %1 = arith.extui %0 : i1 to i32
    %c0_i32_0 = arith.constant 0 : i32
    %2 = arith.cmpi ne, %1, %c0_i32_0 : i32
    scf.if %2 {
      %cst_9 = arith.constant 0.000000e+00 : f32
      %11 = vector.broadcast %cst_9 : f32 to vector<1x4xf32>
      %c0_10 = arith.constant 0 : index
      %c0_11 = arith.constant 0 : index
      %12 = vector.load %arg7[%c0_10, %c0_11] : memref<1x4xf32, #tpu.memory_space<vmem>>, vector<1x4xf32>
      tpu.vector_store %arg7[%c0_10, %c0_11], %11 {strides = array<i32>} : memref<1x4xf32, #tpu.memory_space<vmem>>, vector<1x4xf32>,
    } else {
    }
    %c0 = arith.constant 0 : index
    %c0_1 = arith.constant 0 : index
    %3 = vector.load %arg7[%c0, %c0_1] : memref<1x4xf32, #tpu.memory_space<vmem>>, vector<1x4xf32>
    %c0_2 = arith.constant 0 : index
    %c0_3 = arith.constant 0 : index
    %c0_4 = arith.constant 0 : index
    %4 = vector.load %arg2[%c0_2, %c0_3, %c0_4] : memref<1x4x256xf32, #tpu.memory_space<vmem>>, vector<1x4x256xf32>
    %cst = arith.constant dense<0.000000e+00> : vector<1x4xf32>
    %5 = vector.multi_reduction <add>, %4, %cst [2] : vector<1x4x256xf32> to vector<1x4xf32>
    %6 = arith.addf %3, %5 : vector<1x4xf32>
    %c0_5 = arith.constant 0 : index
    %c0_6 = arith.constant 0 : index
    %7 = vector.load %arg7[%c0_5, %c0_6] : memref<1x4xf32, #tpu.memory_space<vmem>>, vector<1x4xf32>
    tpu.vector_store %arg7[%c0_5, %c0_6], %6 {strides = array<i32>} : memref<1x4xf32, #tpu.memory_space<vmem>>, vector<1x4xf32>,
    %c0_i32_7 = arith.constant 0 : i32
    %8 = arith.cmpi eq, %arg1, %c0_i32_7 : i32
    %9 = arith.extui %8 : i1 to i32
    %c0_i32_8 = arith.constant 0 : i32
    %10 = arith.cmpi ne, %9, %c0_i32_8 : i32
    scf.if %10 {
      %c0_9 = arith.constant 0 : index
      %c0_10 = arith.constant 0 : index
      %11 = vector.load %arg7[%c0_9, %c0_10] : memref<1x4xf32, #tpu.memory_space<vmem>>, vector<1x4xf32>
      %cst_11 = arith.constant 3.906250e-03 : f32
      %12 = vector.broadcast %cst_11 : f32 to vector<1x4xf32>
      %13 = arith.mulf %11, %12 : vector<1x4xf32>
      %c0_12 = arith.constant 0 : index
      %c0_13 = arith.constant 0 : index
      %14 = vector.load %arg3[%c0_12, %c0_13] : memref<4x8xf32, #tpu.memory_space<vmem>>, vector<4x8xf32>
      %cst_14 = arith.constant dense<0.000000e+00> : vector<1x8xf32>
      %15 = tpu.matmul %13, %14, %cst_14 {dimension_numbers = #tpu.dot_dimension_numbers<[1], [0], [0], [1], [0, 0, 1, 1], [], []>} : vector<1x4xf32>, vector<4x8xf32>, vector<1x8xf32> -> vector<1x8xf32>
      %c0_15 = arith.constant 0 : index
      %c0_16 = arith.constant 0 : index
      %16 = vector.load %arg4[%c0_15, %c0_16] : memref<1x8xf32, #tpu.memory_space<vmem>>, vector<1x8xf32>
      %17 = arith.mulf %15, %16 : vector<1x8xf32>
      %c0_17 = arith.constant 0 : index
      %c0_18 = arith.constant 0 : index
      %18 = vector.load %arg5[%c0_17, %c0_18] : memref<1x8xf32, #tpu.memory_space<vmem>>, vector<1x8xf32>
      %19 = arith.addf %17, %18 : vector<1x8xf32>
      %cst_19 = arith.constant 0.000000e+00 : f32
      %20 = vector.broadcast %cst_19 : f32 to vector<1x8xf32>
      %21 = arith.maximumf %19, %20 : vector<1x8xf32>
      %22 = vector.shape_cast %21 : vector<1x8xf32> to vector<1x1x8xf32>
      %c0_20 = arith.constant 0 : index
      %c0_21 = arith.constant 0 : index
      %c0_22 = arith.constant 0 : index
      %23 = vector.load %arg6[%c0_20, %c0_21, %c0_22] : memref<1x1x8xf32, #tpu.memory_space<vmem>>, vector<1x1x8xf32>
      tpu.vector_store %arg6[%c0_20, %c0_21, %c0_22], %22 {strides = array<i32>} : memref<1x1x8xf32, #tpu.memory_space<vmem>>, vector<1x1x8xf32>,
    } else {
    }
    return
  }
  func.func @transform_0(%arg0: i32, %arg1: i32) -> (i32, i32, i32) {
    %c0_i32 = arith.constant 0 : i32
    %c0_i32_0 = arith.constant 0 : i32
    return %arg0, %c0_i32, %arg1 : i32, i32, i32
  }
  func.func @transform_1(%arg0: i32, %arg1: i32) -> (i32, i32) {
    %c0_i32 = arith.constant 0 : i32
    %c0_i32_0 = arith.constant 0 : i32
    %c0_i32_1 = arith.constant 0 : i32
    return %c0_i32, %c0_i32_0 : i32, i32
  }
  func.func @transform_2(%arg0: i32, %arg1: i32) -> (i32, i32) {
    %c0_i32 = arith.constant 0 : i32
    %c0_i32_0 = arith.constant 0 : i32
    %c0_i32_1 = arith.constant 0 : i32
    return %c0_i32, %c0_i32_0 : i32, i32
  }
  func.func @transform_3(%arg0: i32, %arg1: i32) -> (i32, i32) {
    %c0_i32 = arith.constant 0 : i32
    %c0_i32_0 = arith.constant 0 : i32
    %c0_i32_1 = arith.constant 0 : i32
    return %c0_i32, %c0_i32_0 : i32, i32
  }
  func.func @transform_4(%arg0: i32, %arg1: i32) -> (i32, i32, i32) {
    %c0_i32 = arith.constant 0 : i32
    %c0_i32_0 = arith.constant 0 : i32
    %c0_i32_1 = arith.constant 0 : i32
    return %arg0, %c0_i32, %c0_i32_0 : i32, i32, i32
  }
}

</mosaic_0001>

<llo_original>
// kernel: tpu_custom_call.1
$region0: #{tpu_custom_call.1}
  #allocation0 [shape = 'u32[]', space=smem, size = 0x4, offset = 0x4, fixed_abs, tag = 'smem constant byte address 0x4 - core index']
  #allocation1 [shape = 'u32[144,128]{1,0:T(1,128)}', space=vmem, size = 0x12000, scoped, tag = 'internal scratch']
  #allocation2 [shape = 'f32[1,4]{1,0:T(1,128)}', space=vmem, size = 0x200, scoped, tag = 'scratch operand']
  %s0 = inlined_call_operand.hbm [shape: f32[2,4,256], index: 0, kind: input, shape index: {}]
  %s1 = inlined_call_operand.hbm [shape: f32[4,8], index: 1, kind: input, shape index: {}]
  %s2 = inlined_call_operand.vmem [shape: f32[1,8], index: 2, kind: input, shape index: {}]
  %s3 = inlined_call_operand.vmem [shape: f32[1,8], index: 3, kind: input, shape index: {}]
  %s4 = inlined_call_operand.hbm [shape: f32[2,1,8], index: 4, kind: output, shape index: {}]
  %s5 = sld [smem:[#allocation0]]
  $region65: #{tpu_custom_call.1} parent=0
    _
  %s7 = ssub.s32 1, %s5
  %s8 = scalar_select 0, %s7, %s5
  $region1: #{tpu_custom_call.1} parent=0
    #allocation3 [shape = 'u8[8192]{0}', space=vmem, size = 0x2000, scoped, tag = 'input window, operand 0']
    #allocation4 [shape = 's32[2]{0}', space=sflag, size = 0x8, scoped, tag = 'scoped memory for tpu_custom_call.1']
    #allocation5 [shape = 's32[2]{0}', space=sflag, size = 0x8, scoped, tag = 'scoped memory for tpu_custom_call.1']
    #allocation6 [shape = 'u8[2048]{0}', space=vmem, size = 0x800, scoped, tag = 'input window, operand 1, single buffered']
    #allocation7 [shape = 's32[1]{0}', space=sflag, size = 0x4, scoped, tag = 'scoped memory for tpu_custom_call.1']
    #allocation8 [shape = 'u8[1024]{0}', space=vmem, size = 0x400, scoped, tag = 'output window, operand 0']
    %9 = vsyncpa [#allocation4], 0
    %s10 = scalar_lea.sflag [#allocation4], 1
    %11 = vsyncpa %s10, 0
    %12 = vsyncpa [#allocation7], 0
    %13 = vsyncpa [#allocation5], 0
    %s14 = scalar_lea.sflag [#allocation5], 1
    %15 = vsyncpa %s14, 0
    loop: start=0, step=1, limit=4
    $region2: #{tpu_custom_call.1} parent=1 // loop_pre_header
      _
    $region3: #{tpu_custom_call.1} parent=1 // loop_header
      %s17 = sphi 0, %s21
      %p18 = scmp.ge.s32.totalorder %s17, 4
      %s24 = sphi 0, %s36
      %s25 = sphi 0, %s32
      %s26 = sphi 0, %s24
      %s27 = sphi 0, %s25
      %s28 = sphi 0, %s26
      %s29 = sphi 0, %s27
      %s41 = sphi 0, %s43
      %s44 = sphi 0, %s41
      %s45 = sphi 0, %s44
      %s61 = sphi 0, %s45
      %s65 = sphi 0, %s65
      %s67 = sphi 0, %s65
      %s68 = sphi 0, %s67
      %s82 = sphi 0, %s68
      %s86 = sphi 0, %s86
      %s88 = sphi 0, %s86
      %s89 = sphi 0, %s88
      %s103 = sphi 0, %s89
      %s107 = sphi 0, %s107
      %s109 = sphi 0, %s107
      %s110 = sphi 0, %s109
      %s124 = sphi 0, %s110
      %s130 = sphi 0, %s132
      %s133 = sphi 0, %s130
      %s134 = sphi 0, %s133
      %s150 = sphi 0, %s134
    $region4: #{tpu_custom_call.1} parent=1 // loop_header_branch
      %20 = sbr.rel (%p18) target = $region8
    $region5: #{tpu_custom_call.1} parent=1 // loop_body
      %s22 = ssub.s32 %s17, 1
      %s23 = ssub.s32 %s17, 2
      %s30 = sadd.s32 1, %s25
      %p31 = scmp.ge.s32.totalorder %s30, 1
      %s32 = scalar_select %p31, 0, %s30
      %s33 = sadd.s32 1, %s24
      %s34 = scalar_select %p31, %s33, %s24
      %p35 = scmp.ge.s32.totalorder %s34, 2
      %s36 = scalar_select %p35, 0, %s34
      %s37 = ssub.s32 %s24, %s36
      %s38 = ssub.s32 %s25, %s32
      %s39 = sor.u32 %s37, %s38
      %p40 = scmp.eq.s32.totalorder %s39, 0
      %s42 = sadd.s32 %s41, 1
      %s43 = scalar_select %p40, %s41, %s42
      %p46 = pneg %p40
      %p47 = scmp.eq.s32.totalorder %s17, 1
      %p48 = por %p46, %p47
      %p49 = scmp.ne.s32.totalorder %s41, %s44
      %p50 = scmp.eq.s32.totalorder %s17, 0
      %p51 = por %p49, %p50
      %p52 = scmp.ne.s32.totalorder %s41, %s44
      %p53 = scmp.eq.s32.totalorder %s22, 1
      %p54 = por %p52, %p53
      %p55 = scmp.ne.s32.totalorder %s44, %s45
      %p56 = scmp.eq.s32.totalorder %s22, 0
      %p57 = por %p55, %p56
      %p58 = scmp.ne.s32.totalorder %s44, %s45
      %p59 = scmp.eq.s32.totalorder %s23, 1
      %p60 = por %p58, %p59
      %p62 = scmp.ne.s32.totalorder %s45, %s61
      %p63 = scmp.eq.s32.totalorder %s23, 0
      %p64 = por %p62, %p63
      %s66 = sadd.s32 %s65, 1
      %p69 = scmp.eq.s32.totalorder %s17, 1
      %p70 = scmp.ne.s32.totalorder %s65, %s67
      %p71 = scmp.eq.s32.totalorder %s17, 0
      %p72 = por %p70, %p71
      %p73 = scmp.ne.s32.totalorder %s65, %s67
      %p74 = scmp.eq.s32.totalorder %s22, 1
      %p75 = por %p73, %p74
      %p76 = scmp.ne.s32.totalorder %s67, %s68
      %p77 = scmp.eq.s32.totalorder %s22, 0
      %p78 = por %p76, %p77
      %p79 = scmp.ne.s32.totalorder %s67, %s68
      %p80 = scmp.eq.s32.totalorder %s23, 1
      %p81 = por %p79, %p80
      %p83 = scmp.ne.s32.totalorder %s68, %s82
      %p84 = scmp.eq.s32.totalorder %s23, 0
      %p85 = por %p83, %p84
      %s87 = sadd.s32 %s86, 1
      %p90 = scmp.eq.s32.totalorder %s17, 1
      %p91 = scmp.ne.s32.totalorder %s86, %s88
      %p92 = scmp.eq.s32.totalorder %s17, 0
      %p93 = por %p91, %p92
      %p94 = scmp.ne.s32.totalorder %s86, %s88
      %p95 = scmp.eq.s32.totalorder %s22, 1
      %p96 = por %p94, %p95
      %p97 = scmp.ne.s32.totalorder %s88, %s89
      %p98 = scmp.eq.s32.totalorder %s22, 0
      %p99 = por %p97, %p98
      %p100 = scmp.ne.s32.totalorder %s88, %s89
      %p101 = scmp.eq.s32.totalorder %s23, 1
      %p102 = por %p100, %p101
      %p104 = scmp.ne.s32.totalorder %s89, %s103
      %p105 = scmp.eq.s32.totalorder %s23, 0
      %p106 = por %p104, %p105
      %s108 = sadd.s32 %s107, 1
      %p111 = scmp.eq.s32.totalorder %s17, 1
      %p112 = scmp.ne.s32.totalorder %s107, %s109
      %p113 = scmp.eq.s32.totalorder %s17, 0
      %p114 = por %p112, %p113
      %p115 = scmp.ne.s32.totalorder %s107, %s109
      %p116 = scmp.eq.s32.totalorder %s22, 1
      %p117 = por %p115, %p116
      %p118 = scmp.ne.s32.totalorder %s109, %s110
      %p119 = scmp.eq.s32.totalorder %s22, 0
      %p120 = por %p118, %p119
      %p121 = scmp.ne.s32.totalorder %s109, %s110
      %p122 = scmp.eq.s32.totalorder %s23, 1
      %p123 = por %p121, %p122
      %p125 = scmp.ne.s32.totalorder %s110, %s124
      %p126 = scmp.eq.s32.totalorder %s23, 0
      %p127 = por %p125, %p126
      %s128 = ssub.s32 %s24, %s36
      %p129 = scmp.eq.s32.totalorder %s128, 0
      %s131 = sadd.s32 %s130, 1
      %s132 = scalar_select %p129, %s130, %s131
      %p135 = pneg %p129
      %p136 = scmp.eq.s32.totalorder %s17, 1
      %p137 = por %p135, %p136
      %p138 = scmp.ne.s32.totalorder %s130, %s133
      %p139 = scmp.eq.s32.totalorder %s17, 0
      %p140 = por %p138, %p139
      %p141 = scmp.ne.s32.totalorder %s130, %s133
      %p142 = scmp.eq.s32.totalorder %s22, 1
      %p143 = por %p141, %p142
      %p144 = scmp.ne.s32.totalorder %s133, %s134
      %p145 = scmp.eq.s32.totalorder %s22, 0
      %p146 = por %p144, %p145
      %p147 = scmp.ne.s32.totalorder %s133, %s134
      %p148 = scmp.eq.s32.totalorder %s23, 1
      %p149 = por %p147, %p148
      %p151 = scmp.ne.s32.totalorder %s134, %s150
      %p152 = scmp.eq.s32.totalorder %s23, 0
      %p153 = por %p151, %p152
      %p154 = scmp.le.s32.totalorder 1, %s17
      %p155 = scmp.lt.s32.totalorder %s17, 3
      %p156 = pnand %p154, %p155
      %p157 = pneg %p156
      // Predicated region
      $region9: #{tpu_custom_call.1} parent=5 // pred_check
        _
      $region10: #{tpu_custom_call.1} parent=5 // pred_check_branch
        %159 = sbr.rel (%p156) target = $region12
      $region11: #{tpu_custom_call.1} parent=5 // pred_region
        %s160 = ssub.s32 %s17, 1
        // Predicated region
        $region13: #{tpu_custom_call.1} parent=11 // pred_check
          %p161 = pneg %p78
        $region14: #{tpu_custom_call.1} parent=11 // pred_check_branch
          %163 = sbr.rel (%p161) target = $region16
        $region15: #{tpu_custom_call.1} parent=11 // pred_region
          %s165 = ssub.s32 64, 64
          %166 = vsyncadd [#allocation7], %s165
          %s168 = sshll.u32 [#allocation6], 4
          %s169 = int_to_ptr.vmem [resolvable:$true] %s168
          %171 = dma.hbm_to_vmem [thread:$0]  %s1, 64, %s169, [#allocation7]
        $region16: #{tpu_custom_call.1} parent=11 // pred_fallthru
          _
        // Predicated region
        $region17: #{tpu_custom_call.1} parent=11 // pred_check
          %p172 = pneg %p99
        $region18: #{tpu_custom_call.1} parent=11 // pred_check_branch
          %174 = sbr.rel (%p172) target = $region20
        $region19: #{tpu_custom_call.1} parent=11 // pred_region
          _
        $region20: #{tpu_custom_call.1} parent=11 // pred_fallthru
          _
        // Predicated region
        $region21: #{tpu_custom_call.1} parent=11 // pred_check
          %p175 = pneg %p120
        $region22: #{tpu_custom_call.1} parent=11 // pred_check_branch
          %177 = sbr.rel (%p175) target = $region24
        $region23: #{tpu_custom_call.1} parent=11 // pred_region
          _
        $region24: #{tpu_custom_call.1} parent=11 // pred_fallthru
          _
      $region12: #{tpu_custom_call.1} parent=5 // pred_fallthru
        _
      %p178 = scmp.lt.s32.totalorder %s17, 2
      // Predicated region
      $region25: #{tpu_custom_call.1} parent=5 // pred_check
        %p179 = pneg %p178
      $region26: #{tpu_custom_call.1} parent=5 // pred_check_branch
        %181 = sbr.rel (%p179) target = $region28
      $region27: #{tpu_custom_call.1} parent=5 // pred_region
        // Predicated region
        $region29: #{tpu_custom_call.1} parent=27 // pred_check
          %p182 = pneg %p51
        $region30: #{tpu_custom_call.1} parent=27 // pred_check_branch
          %184 = sbr.rel (%p182) target = $region32
        $region31: #{tpu_custom_call.1} parent=27 // pred_region
          %s185 = sand.u32 %s41, 1
          %s186 = scalar_lea.sflag [#allocation4], %s185
          %s187 = sand.u32 %s41, 1
          %s188 = smul.addr %s187, 8
          %s189 = scalar_lea.vmem [#allocation3], %s188
          %s190 = smul.u32 2, %s25
          %s192 = ssub.s32 128, 128
          %193 = vsyncadd %s186, %s192
          %s194 = smul.addr %s24, 2
          %s195 = sadd.s32 %s190, %s194
          %s196 = smul.addr %s195, 64
          %s197 = scalar_lea.hbm %s0, %s196
          %s199 = sshll.u32 %s189, 4
          %s200 = int_to_ptr.vmem [resolvable:$true] %s199
          %202 = dma.hbm_to_vmem [thread:$0]  %s197, 128, %s200, %s186
        $region32: #{tpu_custom_call.1} parent=27 // pred_fallthru
          _
      $region28: #{tpu_custom_call.1} parent=5 // pred_fallthru
        _
      %p203 = scmp.le.s32.totalorder 1, %s17
      %p204 = scmp.lt.s32.totalorder %s17, 3
      %p205 = pnand %p203, %p204
      %p206 = pneg %p205
      // Predicated region
      $region33: #{tpu_custom_call.1} parent=5 // pred_check
        _
      $region34: #{tpu_custom_call.1} parent=5 // pred_check_branch
        %208 = sbr.rel (%p205) target = $region36
      $region35: #{tpu_custom_call.1} parent=5 // pred_region
        %s209 = ssub.s32 %s17, 1
        %s210 = sand.u32 %s44, 1
        %s211 = scalar_lea.sflag [#allocation4], %s210
        %s212 = sand.u32 %s44, 1
        %s213 = smul.addr %s212, 8
        %s214 = scalar_lea.vmem [#allocation3], %s213
        // Predicated region
        $region37: #{tpu_custom_call.1} parent=35 // pred_check
          %p215 = pneg %p57
        $region38: #{tpu_custom_call.1} parent=35 // pred_check_branch
          %217 = sbr.rel (%p215) target = $region40
        $region39: #{tpu_custom_call.1} parent=35 // pred_region
          %218 = dma.done %s211, 128
        $region40: #{tpu_custom_call.1} parent=35 // pred_fallthru
          _
        // Predicated region
        $region41: #{tpu_custom_call.1} parent=35 // pred_check
          %p219 = pneg %p78
        $region42: #{tpu_custom_call.1} parent=35 // pred_check_branch
          %221 = sbr.rel (%p219) target = $region44
        $region43: #{tpu_custom_call.1} parent=35 // pred_region
          %222 = dma.done [#allocation7], 64
        $region44: #{tpu_custom_call.1} parent=35 // pred_fallthru
          _
        %s223 = sand.u32 %s44, 1
        %s224 = scalar_lea.sflag [#allocation4], %s223
        %s225 = sand.u32 %s44, 1
        %s226 = smul.addr %s225, 8
        %s227 = scalar_lea.vmem [#allocation3], %s226
        %p228 = pneg %p57
        %p229 = pneg %p54
        %p230 = pneg %p78
        %p231 = pneg %p75
        %p232 = pneg %p99
        %p233 = pneg %p96
        %p234 = pneg %p120
        %p235 = pneg %p117
        %p236 = pneg %p146
        %p237 = pneg %p143
        %s238 = sand.u32 %s133, 1
        %s239 = scalar_lea.sflag [#allocation5], %s238
        %s240 = sand.u32 %s133, 1
        %s241 = scalar_lea.vmem [#allocation8], %s240
        %s242 = smul.u32 2, %s27
        %p243 = scmp.eq.s32.totalorder %s27, 0
        // Predicated region
        $region45: #{tpu_custom_call.1} parent=35 // pred_check
          %p244 = pneg %p243
        $region46: #{tpu_custom_call.1} parent=35 // pred_check_branch
          %246 = sbr.rel (%p244) target = $region48
        $region47: #{tpu_custom_call.1} parent=35 // pred_region
          %vm247 = vcmask 24576
          %248 = vst.msk [vmem:[#allocation2] sm:$0x1] %vm247, 0.0
        $region48: #{tpu_custom_call.1} parent=35 // pred_fallthru
          _
        %v249 = vld [vmem:[#allocation2] sm:$0x1]
        %v250 = vld [vmem:[%s214] sm:$0xff]
        %v252 = vcombine.high %v250, %v250
        %vm254 = vcmask 1043456
        %v255 = vsel %vm254, %v250, 0.0
        %v256 = vsel %vm254, %v252, 0.0
        %v257 = vadd.f32 %v255, %v256
        %258 = vadd.xlane.f32.xlu0 %v257
        %v259 = vpop.xlane.xlu0 %258
        %v261 = vlaneseq
        %v262 = vshrl.u32 %v261, 7
        %v263 = vsub.s32 0, %v262
        %v264 = vrot.slane %v259, %v263
        %v265 = vlaneseq
        %v266 = vshrl.u32 %v265, 7
        %v267 = vsub.s32 1, %v266
        %v268 = vrot.slane %v259, %v267
        %v269 = vlaneseq
        %v270 = vshrl.u32 %v269, 7
        %v271 = vsub.s32 2, %v270
        %v272 = vrot.slane %v259, %v271
        %v273 = vlaneseq
        %v274 = vshrl.u32 %v273, 7
        %v275 = vsub.s32 3, %v274
        %v276 = vrot.slane %v259, %v275
        %v277 = vcombine.low %v264, %v268
        %v278 = vcombine.low %v272, %v276
        %v280 = vunpack.c.l.s4 1966171168
        %v281 = vunpack.c.0.s8 %v280
        %v282 = vlaneseq
        %v283 = vshrl.u32 %v282, 7
        %v284 = vsub.s32 %v281, %v283
        %v285 = vrot.slane %v277, %v284
        %v287 = vunpack.c.l.s4 1966171168
        %v288 = vunpack.c.0.s8 %v287
        %v289 = vlaneseq
        %v290 = vshrl.u32 %v289, 7
        %v291 = vsub.s32 %v288, %v290
        %v292 = vrot.slane %v278, %v291
        %v293 = vcombine.low %v285, %v292
        %v295 = vunpack.c.l.s4 1966171168
        %v296 = vunpack.c.0.s8 %v295
        %v297 = vlaneseq
        %v298 = vshrl.u32 %v297, 7
        %v299 = vsub.s32 %v296, %v298
        %v300 = vrot.slane %v293, %v299
        %301 = vset.pattern.permute.xlu0 0
        %302 = vperm.xlu0 %301, %v300
        %v303 = vpop.permute.xlu0 %302
        %v304 = vlaneseq
        %v305 = vand.u32 %v304, 127
        %v306 = vlaneseq
        %v307 = vshrl.u32 %v306, 7
        %v308 = vsub.s32 %v305, %v307
        %v309 = vrot.slane %v303, %v308
        %v311 = vunpack.c.l.s4 1966171168
        %v312 = vunpack.c.0.s8 %v311
        %v313 = vlaneseq
        %v314 = vshrl.u32 %v313, 7
        %v315 = vsub.s32 %v312, %v314
        %v316 = vrot.slane %v309, %v315
        %v318 = vunpack.c.l.s4 1966171168
        %v319 = vunpack.c.0.s8 %v318
        %v320 = vlaneseq
        %v321 = vshrl.u32 %v320, 7
        %v322 = vsub.s32 %v319, %v321
        %v323 = vrot.slane %v316, %v322
        %v325 = vadd.f32 %v249, %v323
        %vm326 = vcmask 24576
        %327 = vst.msk [vmem:[#allocation2] sm:$0x1] %vm326, %v325
        // Predicated region
        $region49: #{tpu_custom_call.1} parent=35 // pred_check
          %p328 = pneg %p243
        $region50: #{tpu_custom_call.1} parent=35 // pred_check_branch
          %330 = sbr.rel (%p328) target = $region52
        $region51: #{tpu_custom_call.1} parent=35 // pred_region
          %v331 = vld [vmem:[#allocation2] sm:$0x1]
          %v332 = vmul.f32 %v331, 0.00390625
          %v333 = vld [vmem:[#allocation6] sm:$0xf]
          %vm334 = vcmask 31744
          %v336 = vsel %vm334, %v332, 0
          %v339 = vsel %vm254, %v333, 0
          %341 = vmatprep.subr.mxu0 0.0
          %342 = vmatpush1.msra.mxu0 0.0
          %343 = vmatprep.subr.mxu0 0.0
          %344 = vmatpush1.msra.mxu0 0.0
          %345 = vmatprep.subr.mxu0 0.0
          %346 = vmatpush1.msra.mxu0 0.0
          %347 = vmatprep.subr.mxu0 0.0
          %348 = vmatpush1.msra.mxu0 0.0
          %349 = vmatprep.subr.mxu0 0.0
          %350 = vmatpush1.msra.mxu0 0.0
          %351 = vmatprep.subr.mxu0 0.0
          %352 = vmatpush1.msra.mxu0 0.0
          %353 = vmatprep.subr.mxu0 0.0
          %354 = vmatpush1.msra.mxu0 0.0
          %355 = vmatprep.subr.mxu0 0.0
          %356 = vmatpush1.msra.mxu0 0.0
          %357 = vmatprep.subr.mxu0 0.0
          %358 = vmatpush1.msra.mxu0 0.0
          %359 = vmatprep.subr.mxu0 0.0
          %360 = vmatpush1.msra.mxu0 0.0
          %361 = vmatprep.subr.mxu0 0.0
          %362 = vmatpush1.msra.mxu0 0.0
          %363 = vmatprep.subr.mxu0 0.0
          %364 = vmatpush1.msra.mxu0 0.0
          %365 = vmatprep.subr.mxu0 0.0
          %366 = vmatpush1.msra.mxu0 0.0
          %367 = vmatprep.subr.mxu0 0.0
          %368 = vmatpush1.msra.mxu0 0.0
          %369 = vmatprep.subr.mxu0 0.0
          %370 = vmatpush1.msra.mxu0 0.0
          %371 = vmatprep.subr.mxu0 0.0
          %372 = vmatpush1.msra.mxu0 %v339
          %373 = vmatprep.subr.mxu0 0.0
          %374 = vmatpush2.msra.mxu0 0.0
          %375 = vmatprep.subr.mxu0 0.0
          %376 = vmatpush2.msra.mxu0 0.0
          %377 = vmatprep.subr.mxu0 0.0
          %378 = vmatpush2.msra.mxu0 0.0
          %379 = vmatprep.subr.mxu0 0.0
          %380 = vmatpush2.msra.mxu0 0.0
          %381 = vmatprep.subr.mxu0 0.0
          %382 = vmatpush2.msra.mxu0 0.0
          %383 = vmatprep.subr.mxu0 0.0
          %384 = vmatpush2.msra.mxu0 0.0
          %385 = vmatprep.subr.mxu0 0.0
          %386 = vmatpush2.msra.mxu0 0.0
          %387 = vmatprep.subr.mxu0 0.0
          %388 = vmatpush2.msra.mxu0 0.0
          %389 = vmatprep.subr.mxu0 0.0
          %390 = vmatpush2.msra.mxu0 0.0
          %391 = vmatprep.subr.mxu0 0.0
          %392 = vmatpush2.msra.mxu0 0.0
          %393 = vmatprep.subr.mxu0 0.0
          %394 = vmatpush2.msra.mxu0 0.0
          %395 = vmatprep.subr.mxu0 0.0
          %396 = vmatpush2.msra.mxu0 0.0
          %397 = vmatprep.subr.mxu0 0.0
          %398 = vmatpush2.msra.mxu0 0.0
          %399 = vmatprep.subr.mxu0 0.0
          %400 = vmatpush2.msra.mxu0 0.0
          %401 = vmatprep.subr.mxu0 0.0
          %402 = vmatpush2.msra.mxu0 0.0
          %403 = vmatprep.subr.mxu0 0.0
          %404 = vmatpush2.msra.mxu0 0.0
          %405 = vmatprep.mubr.f32.mxu0 0.0
          %406 = vmatmul.mubr.f32.gmra.mxu0 %v336
          %v407 = vpop.f32.mrf.mxu0
          %v408 = vadd.f32 0.0, %v407
          %v409 = vpop.f32.mrf.mxu0
          %410 = vdwg.mxu0
          %v411 = vld [vmem:[%s2] sm:$0x1]
          %v412 = vmul.f32 %v408, %v411
          %v413 = vld [vmem:[%s3] sm:$0x1]
          %v414 = vadd.f32 %v412, %v413
          %v415 = vmax.f32 %v414, 0.0
          %vm416 = vcmask 57344
          %417 = vst.msk [vmem:[%s241] sm:$0x1] %vm416, %v415
        $region52: #{tpu_custom_call.1} parent=35 // pred_fallthru
          _
        %s418 = sand.u32 %s133, 1
        %s419 = scalar_lea.sflag [#allocation5], %s418
        %s420 = sand.u32 %s133, 1
        %s421 = scalar_lea.vmem [#allocation8], %s420
        // Predicated region
        $region53: #{tpu_custom_call.1} parent=35 // pred_check
          %p422 = pneg %p143
        $region54: #{tpu_custom_call.1} parent=35 // pred_check_branch
          %424 = sbr.rel (%p422) target = $region56
        $region55: #{tpu_custom_call.1} parent=35 // pred_region
          %s426 = ssub.s32 16, 16
          %427 = vsyncadd %s419, %s426
          %s428 = smul.addr %s26, 16
          %s429 = scalar_lea.hbm %s4, %s428
          %s431 = sshll.u32 %s421, 4
          %s432 = int_to_ptr.vmem [resolvable:$true] %s431
          %434 = dma.vmem_to_hbm [thread:$0]  %s432, 16, %s429, %s419
        $region56: #{tpu_custom_call.1} parent=35 // pred_fallthru
          _
      $region36: #{tpu_custom_call.1} parent=5 // pred_fallthru
        _
      %p435 = scmp.le.s32.totalorder 2, %s17
      // Predicated region
      $region57: #{tpu_custom_call.1} parent=5 // pred_check
        %p436 = pneg %p435
      $region58: #{tpu_custom_call.1} parent=5 // pred_check_branch
        %438 = sbr.rel (%p436) target = $region60
      $region59: #{tpu_custom_call.1} parent=5 // pred_region
        %s439 = ssub.s32 %s17, 2
        // Predicated region
        $region61: #{tpu_custom_call.1} parent=59 // pred_check
          %p440 = pneg %p149
        $region62: #{tpu_custom_call.1} parent=59 // pred_check_branch
          %442 = sbr.rel (%p440) target = $region64
        $region63: #{tpu_custom_call.1} parent=59 // pred_region
          %s443 = sand.u32 %s134, 1
          %s444 = scalar_lea.sflag [#allocation5], %s443
          %s445 = sand.u32 %s134, 1
          %s446 = scalar_lea.vmem [#allocation8], %s445
          %447 = dma.done %s444, 16
        $region64: #{tpu_custom_call.1} parent=59 // pred_fallthru
          _
      $region60: #{tpu_custom_call.1} parent=5 // pred_fallthru
        _
    $region6: #{tpu_custom_call.1} parent=1 // loop_footer
      %s21 = sadd.s32 1, %s17
    $region7: #{tpu_custom_call.1} parent=1 // loop_footer_branch
      %16 = sbr.rel target = $region3
    $region8: #{tpu_custom_call.1} parent=1 // loop_exit
      _
    %448 = vsyncpa [#allocation4], 1
    %s449 = scalar_lea.sflag [#allocation4], 1
    %450 = vsyncpa %s449, 1
    %451 = vsyncpa [#allocation7], 1
    %452 = vsyncpa [#allocation5], 1
    %s453 = scalar_lea.sflag [#allocation5], 1
    %454 = vsyncpa %s453, 1

</llo_original>
